<compile_context>
chip_gen: v7x
topology: tpu7x:2x2x1
jax: 0.10.0
libtpu: 0.0.40
codegen_flags: <defaults>
</compile_context>

<pallas_src>
import math

import jax
import jax.numpy as jnp
from jax.experimental import pallas as pl
from jax.experimental.pallas import tpu as pltpu


def _round_up(x, m):
    return ((x + m - 1) // m) * m


def _critic_kernel(x_ref, w1_ref, ab_ref, w2_ref, b2_ref, w3_ref, b3_ref, o_ref):
    # x_ref : (tm, obs_dim)  row tile of observations
    # w1_ref: (obs_dim, h1)  layer-1 weights for the obs features (resident)
    # ab_ref: (tm, h1)       per-row agent bias = W1[obs_dim + agent_id] + b1 (resident)
    # w2_ref: (h1, h2), b2_ref: (1, h2)
    # w3_ref: (1, h2)        final layer as a row vector (N=1 matmul -> mul + reduce)
    # b3_ref: (1,) scalar in SMEM
    # o_ref : (1, 1, tm)     lane-dense output slab
    x = x_ref[...]
    h = jnp.dot(x, w1_ref[...], preferred_element_type=jnp.float32) + ab_ref[...]
    h = jnp.maximum(h, 0.0)
    h = jnp.dot(h, w2_ref[...], preferred_element_type=jnp.float32) + b2_ref[...]
    h = jnp.maximum(h, 0.0)
    v = jnp.sum(h * w3_ref[...], axis=-1) + b3_ref[0]          # (tm,) on VPU/XLU
    o_ref[...] = v.reshape(1, 1, -1).astype(o_ref.dtype)


def critic_forward(obs, params, n_agents, *, tm_target=1024):
    """obs: (bs, max_t, n_agents, obs_dim) float32. Returns (bs, max_t, n_agents, 1)."""
    bs, max_t, na, obs_dim = obs.shape
    assert na == n_agents
    w1, b1, w2, b2, w3, b3 = params
    assert w1.shape[0] == obs_dim + n_agents
    h1 = w1.shape[1]
    h2 = w2.shape[1]

    M = bs * max_t * n_agents
    # Row tile: multiple of 128 (lane-dense output) AND of n_agents (so the
    # agent-bias table is tile-position independent); cap near tm_target but
    # collapse to a single tile for tiny problems.
    unit = (128 * n_agents) // math.gcd(128, n_agents)         # lcm(128, n_agents)
    tm = _round_up(min(max(M, 1), tm_target), unit)
    grid_m = pl.cdiv(M, tm)                                     # uneven tail tile is OK

    # Observations as a flat row-major 2-D slab (free reshape, no concat, no pad).
    x2d = obs.reshape(M, obs_dim)

    # Fold agent-id one-hot + b1 into a per-row additive bias (tiny, resident in VMEM).
    w1_obs = w1[:obs_dim]                                       # (obs_dim, h1)
    w1_agent = w1[obs_dim:]                                     # (n_agents, h1)
    local_agent = jnp.arange(tm, dtype=jnp.int32) % n_agents    # valid: tm % n_agents == 0
    agent_bias = w1_agent[local_agent] + b1                     # (tm, h1)
    w3_row = w3.reshape(1, h2)                                  # (1, h2)
    b3_s = b3.reshape(1)                                        # scalar -> SMEM

    # TODO(synk): optionally stream x2d as bfloat16 on v6e/v7x for ~2x input HBM
    # bandwidth; kept f32 here to match the f32 reference bit-for-bit tolerance.

    out = pl.pallas_call(
        _critic_kernel,
        out_shape=jax.ShapeDtypeStruct((grid_m, 1, tm), jnp.float32),
        grid_spec=pltpu.PrefetchScalarGridSpec(
            num_scalar_prefetch=0,
            grid=(grid_m,),
            in_specs=[
                pl.BlockSpec((tm, obs_dim), lambda i: (i, 0)),        # obs rows: tiled
                pl.BlockSpec((obs_dim, h1), lambda i: (0, 0)),        # weights: resident
                pl.BlockSpec((tm, h1), lambda i: (0, 0)),             # agent bias: resident
                pl.BlockSpec((h1, h2), lambda i: (0, 0)),
                pl.BlockSpec((1, h2), lambda i: (0, 0)),
                pl.BlockSpec((1, h2), lambda i: (0, 0)),
                pl.BlockSpec(memory_space=pltpu.MemorySpace.SMEM),    # b3 scalar
            ],
            out_specs=pl.BlockSpec((1, 1, tm), lambda i: (i, 0, 0)),  # lane-dense slab
        ),
        compiler_params=pltpu.CompilerParams(
            dimension_semantics=("parallel",)),                       # megacore on v7x
    )(x2d, w1_obs, agent_bias, w2, b2, w3_row, b3_s)

    # Garbage rows from the partial last tile (if any) are sliced off here.
    return out.reshape(grid_m * tm)[:M].reshape(bs, max_t, n_agents, 1)


def init_params(key, in_dim, h1, h2):
    """Deterministic init matching nn.Linear shapes (weights stored transposed: (in, out))."""
    ks = jax.random.split(key, 6)

    def lin(kw, kb, fan_in, fan_out):
        bound = 1.0 / jnp.sqrt(fan_in)
        w = jax.random.uniform(kw, (fan_in, fan_out), jnp.float32, -bound, bound)
        b = jax.random.uniform(kb, (1, fan_out), jnp.float32, -bound, bound)
        return w, b

    w1, b1 = lin(ks[0], ks[1], in_dim, h1)
    w2, b2 = lin(ks[2], ks[3], h1, h2)
    w3, b3 = lin(ks[4], ks[5], h2, 1)
    return (w1, b1, w2, b2, w3, b3)


if __name__ == "__main__":
    key = jax.random.PRNGKey(0)

    # small shapes consistent with the module
    bs, max_t, n_agents, obs_dim = 2, 8, 4, 12
    critic_h1, critic_h2 = 32, 32
    in_dim = obs_dim + n_agents   # obs feature dim + agent-id one-hot

    k_obs, k_par = jax.random.split(key)
    obs = jax.random.normal(k_obs, (bs, max_t, n_agents, obs_dim), jnp.float32)
    params = init_params(k_par, in_dim, critic_h1, critic_h2)

    value = critic_forward(obs, params, n_agents)
    value = jax.block_until_ready(value)

    # pure-JAX reference for sanity (original un-fused formulation)
    agent_id = jnp.broadcast_to(jnp.eye(n_agents)[None, None],
                                (bs, max_t, n_agents, n_agents))
    inp = jnp.concatenate([obs, agent_id], axis=-1)
    w1, b1, w2, b2, w3, b3 = params
    ref = jnp.maximum(inp @ w1 + b1, 0.0)
    ref = jnp.maximum(ref @ w2 + b2, 0.0)
    ref = ref @ w3 + b3
    assert value.shape == (bs, max_t, n_agents, 1)
    assert jnp.allclose(value, ref, atol=1e-5, rtol=1e-5)

    print("KERNEL_OK")
</pallas_src>

<mosaic_0001>
module attributes {stable_mosaic.version = 11 : i64} {
  func.func @_critic_kernel(%arg0: i32, %arg1: memref<128x12xf32, #tpu.memory_space<vmem>>, %arg2: memref<12x32xf32, #tpu.memory_space<vmem>>, %arg3: memref<128x32xf32, #tpu.memory_space<vmem>>, %arg4: memref<32x32xf32, #tpu.memory_space<vmem>>, %arg5: memref<1x32xf32, #tpu.memory_space<vmem>>, %arg6: memref<1x32xf32, #tpu.memory_space<vmem>>, %arg7: memref<1xf32, #tpu.memory_space<smem>>, %arg8: memref<1x1x128xf32, #tpu.memory_space<vmem>>) attributes {dimension_semantics = [#tpu.dimension_semantics<parallel>], iteration_bounds = array<i64: 1>, scalar_prefetch = 0 : i64, scratch_operands = 0 : i64, tpu.core_type = #tpu.core_type<tc>, window_params = [{transform_indices = @transform_0, window_bounds = array<i64: 128, 12>}, {pipeline_mode = #tpu.pipeline_mode<synchronous>, transform_indices = @transform_1, window_bounds = array<i64: 12, 32>}, {pipeline_mode = #tpu.pipeline_mode<synchronous>, transform_indices = @transform_2, window_bounds = array<i64: 128, 32>}, {pipeline_mode = #tpu.pipeline_mode<synchronous>, transform_indices = @transform_3, window_bounds = array<i64: 32, 32>}, {pipeline_mode = #tpu.pipeline_mode<synchronous>, transform_indices = @transform_4, window_bounds = array<i64: 1, 32>}, {pipeline_mode = #tpu.pipeline_mode<synchronous>, transform_indices = @transform_5, window_bounds = array<i64: 1, 32>}, {transform_indices = @transform_6, window_bounds = array<i64: 1>}, {transform_indices = @transform_7, window_bounds = array<i64: 1, 1, 128>}]} {
    %c0 = arith.constant 0 : index
    %c0_0 = arith.constant 0 : index
    %0 = vector.load %arg1[%c0, %c0_0] : memref<128x12xf32, #tpu.memory_space<vmem>>, vector<128x12xf32>
    %c0_1 = arith.constant 0 : index
    %c0_2 = arith.constant 0 : index
    %1 = vector.load %arg2[%c0_1, %c0_2] : memref<12x32xf32, #tpu.memory_space<vmem>>, vector<12x32xf32>
    %cst = arith.constant dense<0.000000e+00> : vector<128x32xf32>
    %2 = tpu.matmul %0, %1, %cst {dimension_numbers = #tpu.dot_dimension_numbers<[1], [0], [0], [1], [0, 0, 1, 1], [], []>} : vector<128x12xf32>, vector<12x32xf32>, vector<128x32xf32> -> vector<128x32xf32>
    %c0_3 = arith.constant 0 : index
    %c0_4 = arith.constant 0 : index
    %3 = vector.load %arg3[%c0_3, %c0_4] : memref<128x32xf32, #tpu.memory_space<vmem>>, vector<128x32xf32>
    %4 = arith.addf %2, %3 : vector<128x32xf32>
    %cst_5 = arith.constant 0.000000e+00 : f32
    %5 = vector.broadcast %cst_5 : f32 to vector<128x32xf32>
    %6 = arith.maximumf %4, %5 : vector<128x32xf32>
    %c0_6 = arith.constant 0 : index
    %c0_7 = arith.constant 0 : index
    %7 = vector.load %arg4[%c0_6, %c0_7] : memref<32x32xf32, #tpu.memory_space<vmem>>, vector<32x32xf32>
    %cst_8 = arith.constant dense<0.000000e+00> : vector<128x32xf32>
    %8 = tpu.matmul %6, %7, %cst_8 {dimension_numbers = #tpu.dot_dimension_numbers<[1], [0], [0], [1], [0, 0, 1, 1], [], []>} : vector<128x32xf32>, vector<32x32xf32>, vector<128x32xf32> -> vector<128x32xf32>
    %c0_9 = arith.constant 0 : index
    %c0_10 = arith.constant 0 : index
    %9 = vector.load %arg5[%c0_9, %c0_10] : memref<1x32xf32, #tpu.memory_space<vmem>>, vector<1x32xf32>
    %10 = vector.broadcast %9 : vector<1x32xf32> to vector<128x32xf32>
    %11 = arith.addf %8, %10 : vector<128x32xf32>
    %cst_11 = arith.constant 0.000000e+00 : f32
    %12 = vector.broadcast %cst_11 : f32 to vector<128x32xf32>
    %13 = arith.maximumf %11, %12 : vector<128x32xf32>
    %c0_12 = arith.constant 0 : index
    %c0_13 = arith.constant 0 : index
    %14 = vector.load %arg6[%c0_12, %c0_13] : memref<1x32xf32, #tpu.memory_space<vmem>>, vector<1x32xf32>
    %15 = vector.broadcast %14 : vector<1x32xf32> to vector<128x32xf32>
    %16 = arith.mulf %13, %15 : vector<128x32xf32>
    %cst_14 = arith.constant dense<0.000000e+00> : vector<128xf32>
    %17 = vector.multi_reduction <add>, %16, %cst_14 [1] : vector<128x32xf32> to vector<128xf32>
    %c0_15 = arith.constant 0 : index
    %18 = memref.load %arg7[%c0_15] : memref<1xf32, #tpu.memory_space<smem>>
    %19 = vector.broadcast %18 : f32 to vector<128xf32>
    %20 = arith.addf %17, %19 : vector<128xf32>
    %21 = vector.shape_cast %20 : vector<128xf32> to vector<1x1x128xf32>
    %c0_16 = arith.constant 0 : index
    %c0_17 = arith.constant 0 : index
    %c0_18 = arith.constant 0 : index
    %22 = vector.load %arg8[%c0_16, %c0_17, %c0_18] : memref<1x1x128xf32, #tpu.memory_space<vmem>>, vector<1x1x128xf32>
    tpu.vector_store %arg8[%c0_16, %c0_17, %c0_18], %21 {strides = array<i32>} : memref<1x1x128xf32, #tpu.memory_space<vmem>>, vector<1x1x128xf32>,
    return
  }
  func.func @transform_0(%arg0: i32) -> (i32, i32) {
    %c0_i32 = arith.constant 0 : i32
    %c0_i32_0 = arith.constant 0 : i32
    return %arg0, %c0_i32 : i32, i32
  }
  func.func @transform_1(%arg0: i32) -> (i32, i32) {
    %c0_i32 = arith.constant 0 : i32
    %c0_i32_0 = arith.constant 0 : i32
    %c0_i32_1 = arith.constant 0 : i32
    return %c0_i32, %c0_i32_0 : i32, i32
  }
  func.func @transform_2(%arg0: i32) -> (i32, i32) {
    %c0_i32 = arith.constant 0 : i32
    %c0_i32_0 = arith.constant 0 : i32
    %c0_i32_1 = arith.constant 0 : i32
    return %c0_i32, %c0_i32_0 : i32, i32
  }
  func.func @transform_3(%arg0: i32) -> (i32, i32) {
    %c0_i32 = arith.constant 0 : i32
    %c0_i32_0 = arith.constant 0 : i32
    %c0_i32_1 = arith.constant 0 : i32
    return %c0_i32, %c0_i32_0 : i32, i32
  }
  func.func @transform_4(%arg0: i32) -> (i32, i32) {
    %c0_i32 = arith.constant 0 : i32
    %c0_i32_0 = arith.constant 0 : i32
    %c0_i32_1 = arith.constant 0 : i32
    return %c0_i32, %c0_i32_0 : i32, i32
  }
  func.func @transform_5(%arg0: i32) -> (i32, i32) {
    %c0_i32 = arith.constant 0 : i32
    %c0_i32_0 = arith.constant 0 : i32
    %c0_i32_1 = arith.constant 0 : i32
    return %c0_i32, %c0_i32_0 : i32, i32
  }
  func.func @transform_6(%arg0: i32) -> i32 {
    %c0_i32 = arith.constant 0 : i32
    %c0_i32_0 = arith.constant 0 : i32
    return %c0_i32 : i32
  }
  func.func @transform_7(%arg0: i32) -> (i32, i32, i32) {
    %c0_i32 = arith.constant 0 : i32
    %c0_i32_0 = arith.constant 0 : i32
    %c0_i32_1 = arith.constant 0 : i32
    return %arg0, %c0_i32, %c0_i32_0 : i32, i32, i32
  }
}

</mosaic_0001>

<llo_original>
// kernel: tpu_custom_call.1
$region0: #{tpu_custom_call.1}
  #allocation0 [shape = 'u32[]', space=smem, size = 0x4, offset = 0x4, fixed_abs, tag = 'smem constant byte address 0x4 - core index']
  #allocation1 [shape = 'u32[144,128]{1,0:T(1,128)}', space=vmem, size = 0x12000, scoped, tag = 'internal scratch']
  #allocation2 [shape = 'f32[1]{0:T(128)S(6)}', space=smem, size = 0x200, scoped, tag = 'scoped memory for tpu_custom_call.1']
  %s0 = inlined_call_operand.vmem [shape: f32[64,12], index: 0, kind: input, shape index: {}]
  %s1 = inlined_call_operand.vmem [shape: f32[12,32], index: 1, kind: input, shape index: {}]
  %s2 = inlined_call_operand.vmem [shape: f32[128,32], index: 2, kind: input, shape index: {}]
  %s3 = inlined_call_operand.vmem [shape: f32[32,32], index: 3, kind: input, shape index: {}]
  %s4 = inlined_call_operand.vmem [shape: f32[1,32], index: 4, kind: input, shape index: {}]
  %s5 = inlined_call_operand.vmem [shape: f32[1,32], index: 5, kind: input, shape index: {}]
  %s6 = inlined_call_operand.<no memory space> [shape: f32[1], index: 6, kind: input, shape index: {}]
  %s7 = inlined_call_operand.hbm [shape: f32[1,1,128], index: 7, kind: output, shape index: {}]
  %s8 = sld [smem:[#allocation0]]
  $region38: #{tpu_custom_call.1} parent=0
    _
  %s10 = ssub.s32 1, %s8
  %s11 = scalar_select 0, %s10, %s8
  %12 = sst [smem:[#allocation2]] %s6
  $region1: #{tpu_custom_call.1} parent=0
    #allocation3 [shape = 'u8[512]{0}', space=vmem, size = 0x400, scoped, tag = 'output window, operand 0, single buffered']
    #allocation4 [shape = 's32[1]{0}', space=sflag, size = 0x4, scoped, tag = 'scoped memory for tpu_custom_call.1']
    %13 = vsyncpa [#allocation4], 0
    // Predicated region
    $region2: #{tpu_custom_call.1} parent=1 // pred_check
      _
    $region3: #{tpu_custom_call.1} parent=1 // pred_check_branch
      %15 = sbr.rel (0) target = $region5
    $region4: #{tpu_custom_call.1} parent=1 // pred_region
      _
    $region5: #{tpu_custom_call.1} parent=1 // pred_fallthru
      _
    // Predicated region
    $region6: #{tpu_custom_call.1} parent=1 // pred_check
      _
    $region7: #{tpu_custom_call.1} parent=1 // pred_check_branch
      %17 = sbr.rel (0) target = $region9
    $region8: #{tpu_custom_call.1} parent=1 // pred_region
      _
    $region9: #{tpu_custom_call.1} parent=1 // pred_fallthru
      _
    // Predicated region
    $region10: #{tpu_custom_call.1} parent=1 // pred_check
      _
    $region11: #{tpu_custom_call.1} parent=1 // pred_check_branch
      %19 = sbr.rel (0) target = $region13
    $region12: #{tpu_custom_call.1} parent=1 // pred_region
      _
    $region13: #{tpu_custom_call.1} parent=1 // pred_fallthru
      _
    // Predicated region
    $region14: #{tpu_custom_call.1} parent=1 // pred_check
      _
    $region15: #{tpu_custom_call.1} parent=1 // pred_check_branch
      %21 = sbr.rel (0) target = $region17
    $region16: #{tpu_custom_call.1} parent=1 // pred_region
      _
    $region17: #{tpu_custom_call.1} parent=1 // pred_fallthru
      _
    // Predicated region
    $region18: #{tpu_custom_call.1} parent=1 // pred_check
      _
    $region19: #{tpu_custom_call.1} parent=1 // pred_check_branch
      %23 = sbr.rel (0) target = $region21
    $region20: #{tpu_custom_call.1} parent=1 // pred_region
      _
    $region21: #{tpu_custom_call.1} parent=1 // pred_fallthru
      _
    // Predicated region
    $region22: #{tpu_custom_call.1} parent=1 // pred_check
      _
    $region23: #{tpu_custom_call.1} parent=1 // pred_check_branch
      %25 = sbr.rel (0) target = $region25
    $region24: #{tpu_custom_call.1} parent=1 // pred_region
      _
    $region25: #{tpu_custom_call.1} parent=1 // pred_fallthru
      _
    // Predicated region
    $region26: #{tpu_custom_call.1} parent=1 // pred_check
      _
    $region27: #{tpu_custom_call.1} parent=1 // pred_check_branch
      %27 = sbr.rel (0) target = $region29
    $region28: #{tpu_custom_call.1} parent=1 // pred_region
      _
    $region29: #{tpu_custom_call.1} parent=1 // pred_fallthru
      _
    %v28 = vld [vmem:[%s0] sm:$0xff]
    %v29 = vld [vmem:[%s0 + $0x8] sm:$0xff]
    %v30 = vld [vmem:[%s0 + $0x10] sm:$0xff]
    %v31 = vld [vmem:[%s0 + $0x18] sm:$0xff]
    %v32 = vld [vmem:[%s0 + $0x20] sm:$0xff]
    %v33 = vld [vmem:[%s0 + $0x28] sm:$0xff]
    %v34 = vld [vmem:[%s0 + $0x30] sm:$0xff]
    %v35 = vld [vmem:[%s0 + $0x38] sm:$0xff]
    %v36 = vld [vmem:[%s0 + $0x40] sm:$0xff]
    %v37 = vld [vmem:[%s0 + $0x48] sm:$0xff]
    %v38 = vld [vmem:[%s0 + $0x50] sm:$0xff]
    %v39 = vld [vmem:[%s0 + $0x58] sm:$0xff]
    %v40 = vld [vmem:[%s0 + $0x60] sm:$0xff]
    %v41 = vld [vmem:[%s0 + $0x68] sm:$0xff]
    %v42 = vld [vmem:[%s0 + $0x70] sm:$0xff]
    %v43 = vld [vmem:[%s0 + $0x78] sm:$0xff]
    %v44 = vld [vmem:[%s1] sm:$0xff]
    %v45 = vld [vmem:[%s1 + $0x8] sm:$0xf]
    %v46 = vld [vmem:[%s2] sm:$0xff]
    %v47 = vld [vmem:[%s2 + $0x8] sm:$0xff]
    %v48 = vld [vmem:[%s2 + $0x10] sm:$0xff]
    %v49 = vld [vmem:[%s2 + $0x18] sm:$0xff]
    %v50 = vld [vmem:[%s2 + $0x20] sm:$0xff]
    %v51 = vld [vmem:[%s2 + $0x28] sm:$0xff]
    %v52 = vld [vmem:[%s2 + $0x30] sm:$0xff]
    %v53 = vld [vmem:[%s2 + $0x38] sm:$0xff]
    %v54 = vld [vmem:[%s2 + $0x40] sm:$0xff]
    %v55 = vld [vmem:[%s2 + $0x48] sm:$0xff]
    %v56 = vld [vmem:[%s2 + $0x50] sm:$0xff]
    %v57 = vld [vmem:[%s2 + $0x58] sm:$0xff]
    %v58 = vld [vmem:[%s2 + $0x60] sm:$0xff]
    %v59 = vld [vmem:[%s2 + $0x68] sm:$0xff]
    %v60 = vld [vmem:[%s2 + $0x70] sm:$0xff]
    %v61 = vld [vmem:[%s2 + $0x78] sm:$0xff]
    %vm62 = vcmask 97280
    %v64 = vsel %vm62, %v28, 0
    %v67 = vsel %vm62, %v29, 0
    %v70 = vsel %vm62, %v30, 0
    %v73 = vsel %vm62, %v31, 0
    %v76 = vsel %vm62, %v32, 0
    %v79 = vsel %vm62, %v33, 0
    %v82 = vsel %vm62, %v34, 0
    %v85 = vsel %vm62, %v35, 0
    %v88 = vsel %vm62, %v36, 0
    %v91 = vsel %vm62, %v37, 0
    %v94 = vsel %vm62, %v38, 0
    %v97 = vsel %vm62, %v39, 0
    %v100 = vsel %vm62, %v40, 0
    %v103 = vsel %vm62, %v41, 0
    %v106 = vsel %vm62, %v42, 0
    %v109 = vsel %vm62, %v43, 0
    %vm111 = vcmask 1043456
    %v113 = vsel %vm111, %v45, 0
    %115 = vmatprep.subr.mxu0 0.0
    %116 = vmatpush1.msra.mxu0 %v44
    %117 = vmatprep.subr.mxu0 0.0
    %118 = vmatpush1.msra.mxu0 %v113
    %119 = vmatprep.subr.mxu0 0.0
    %120 = vmatpush1.msra.mxu0 0.0
    %121 = vmatprep.subr.mxu0 0.0
    %122 = vmatpush1.msra.mxu0 0.0
    %123 = vmatprep.subr.mxu0 0.0
    %124 = vmatpush1.msra.mxu0 0.0
    %125 = vmatprep.subr.mxu0 0.0
    %126 = vmatpush1.msra.mxu0 0.0
    %127 = vmatprep.subr.mxu0 0.0
    %128 = vmatpush1.msra.mxu0 0.0
    %129 = vmatprep.subr.mxu0 0.0
    %130 = vmatpush1.msra.mxu0 0.0
    %131 = vmatprep.subr.mxu0 0.0
    %132 = vmatpush1.msra.mxu0 0.0
    %133 = vmatprep.subr.mxu0 0.0
    %134 = vmatpush1.msra.mxu0 0.0
    %135 = vmatprep.subr.mxu0 0.0
    %136 = vmatpush1.msra.mxu0 0.0
    %137 = vmatprep.subr.mxu0 0.0
    %138 = vmatpush1.msra.mxu0 0.0
    %139 = vmatprep.subr.mxu0 0.0
    %140 = vmatpush1.msra.mxu0 0.0
    %141 = vmatprep.subr.mxu0 0.0
    %142 = vmatpush1.msra.mxu0 0.0
    %143 = vmatprep.subr.mxu0 0.0
    %144 = vmatpush1.msra.mxu0 0.0
    %145 = vmatprep.subr.mxu0 0.0
    %146 = vmatpush1.msra.mxu0 0.0
    %147 = vmatprep.subr.mxu0 0.0
    %148 = vmatpush1.msra.mxu0 0.0
    %149 = vmatprep.subr.mxu0 0.0
    %150 = vmatpush1.msra.mxu0 0.0
    %151 = vmatprep.subr.mxu0 0.0
    %152 = vmatpush1.msra.mxu0 0.0
    %153 = vmatprep.subr.mxu0 0.0
    %154 = vmatpush1.msra.mxu0 0.0
    %155 = vmatprep.subr.mxu0 0.0
    %156 = vmatpush1.msra.mxu0 0.0
    %157 = vmatprep.subr.mxu0 0.0
    %158 = vmatpush1.msra.mxu0 0.0
    %159 = vmatprep.subr.mxu0 0.0
    %160 = vmatpush1.msra.mxu0 0.0
    %161 = vmatprep.subr.mxu0 0.0
    %162 = vmatpush1.msra.mxu0 0.0
    %163 = vmatprep.subr.mxu0 0.0
    %164 = vmatpush1.msra.mxu0 0.0
    %165 = vmatprep.subr.mxu0 0.0
    %166 = vmatpush1.msra.mxu0 0.0
    %167 = vmatprep.subr.mxu0 0.0
    %168 = vmatpush1.msra.mxu0 0.0
    %169 = vmatprep.subr.mxu0 0.0
    %170 = vmatpush1.msra.mxu0 0.0
    %171 = vmatprep.subr.mxu0 0.0
    %172 = vmatpush1.msra.mxu0 0.0
    %173 = vmatprep.subr.mxu0 0.0
    %174 = vmatpush1.msra.mxu0 0.0
    %175 = vmatprep.subr.mxu0 0.0
    %176 = vmatpush1.msra.mxu0 0.0
    %177 = vmatprep.subr.mxu0 0.0
    %178 = vmatpush1.msra.mxu0 0.0
    %179 = vmatprep.mubr.f32.mxu0 0.0
    %180 = vmatmul.mubr.f32.gmra.mrb[0].mxu0 %v64
    %v181 = vpop.f32.mrb[0].mxu0
    %v182 = vadd.f32 %v46, %v181
    %v183 = vpop.f32.mrb[0].mxu0
    %184 = vmatprep.mubr.f32.mxu0 0.0
    %185 = vmatmul.mubr.f32.gmra.mrb[0].mxu0 %v67
    %v186 = vpop.f32.mrb[0].mxu0
    %v187 = vadd.f32 %v47, %v186
    %v188 = vpop.f32.mrb[0].mxu0
    %189 = vmatprep.mubr.f32.mxu0 0.0
    %190 = vmatmul.mubr.f32.gmra.mrb[0].mxu0 %v70
    %v191 = vpop.f32.mrb[0].mxu0
    %v192 = vadd.f32 %v48, %v191
    %v193 = vpop.f32.mrb[0].mxu0
    %194 = vmatprep.mubr.f32.mxu0 0.0
    %195 = vmatmul.mubr.f32.gmra.mrb[0].mxu0 %v73
    %v196 = vpop.f32.mrb[0].mxu0
    %v197 = vadd.f32 %v49, %v196
    %v198 = vpop.f32.mrb[0].mxu0
    %199 = vmatprep.mubr.f32.mxu0 0.0
    %200 = vmatmul.mubr.f32.gmra.mrb[0].mxu0 %v76
    %v201 = vpop.f32.mrb[0].mxu0
    %v202 = vadd.f32 %v50, %v201
    %v203 = vpop.f32.mrb[0].mxu0
    %204 = vmatprep.mubr.f32.mxu0 0.0
    %205 = vmatmul.mubr.f32.gmra.mrb[0].mxu0 %v79
    %v206 = vpop.f32.mrb[0].mxu0
    %v207 = vadd.f32 %v51, %v206
    %v208 = vpop.f32.mrb[0].mxu0
    %209 = vmatprep.mubr.f32.mxu0 0.0
    %210 = vmatmul.mubr.f32.gmra.mrb[0].mxu0 %v82
    %v211 = vpop.f32.mrb[0].mxu0
    %v212 = vadd.f32 %v52, %v211
    %v213 = vpop.f32.mrb[0].mxu0
    %214 = vmatprep.mubr.f32.mxu0 0.0
    %215 = vmatmul.mubr.f32.gmra.mrb[0].mxu0 %v85
    %v216 = vpop.f32.mrb[0].mxu0
    %v217 = vadd.f32 %v53, %v216
    %v218 = vpop.f32.mrb[0].mxu0
    %219 = vmatprep.mubr.f32.mxu0 0.0
    %220 = vmatmul.mubr.f32.gmra.mrb[0].mxu0 %v88
    %v221 = vpop.f32.mrb[0].mxu0
    %v222 = vadd.f32 %v54, %v221
    %v223 = vpop.f32.mrb[0].mxu0
    %224 = vmatprep.mubr.f32.mxu0 0.0
    %225 = vmatmul.mubr.f32.gmra.mrb[0].mxu0 %v91
    %v226 = vpop.f32.mrb[0].mxu0
    %v227 = vadd.f32 %v55, %v226
    %v228 = vpop.f32.mrb[0].mxu0
    %229 = vmatprep.mubr.f32.mxu0 0.0
    %230 = vmatmul.mubr.f32.gmra.mrb[0].mxu0 %v94
    %v231 = vpop.f32.mrb[0].mxu0
    %v232 = vadd.f32 %v56, %v231
    %v233 = vpop.f32.mrb[0].mxu0
    %234 = vmatprep.mubr.f32.mxu0 0.0
    %235 = vmatmul.mubr.f32.gmra.mrb[0].mxu0 %v97
    %v236 = vpop.f32.mrb[0].mxu0
    %v237 = vadd.f32 %v57, %v236
    %v238 = vpop.f32.mrb[0].mxu0
    %239 = vmatprep.mubr.f32.mxu0 0.0
    %240 = vmatmul.mubr.f32.gmra.mrb[0].mxu0 %v100
    %v241 = vpop.f32.mrb[0].mxu0
    %v242 = vadd.f32 %v58, %v241
    %v243 = vpop.f32.mrb[0].mxu0
    %244 = vmatprep.mubr.f32.mxu0 0.0
    %245 = vmatmul.mubr.f32.gmra.mrb[0].mxu0 %v103
    %v246 = vpop.f32.mrb[0].mxu0
    %v247 = vadd.f32 %v59, %v246
    %v248 = vpop.f32.mrb[0].mxu0
    %249 = vmatprep.mubr.f32.mxu0 0.0
    %250 = vmatmul.mubr.f32.gmra.mrb[0].mxu0 %v106
    %v251 = vpop.f32.mrb[0].mxu0
    %v252 = vadd.f32 %v60, %v251
    %v253 = vpop.f32.mrb[0].mxu0
    %254 = vmatprep.mubr.f32.mxu0 0.0
    %255 = vmatmul.mubr.f32.gmra.mrb[0].mxu0 %v109
    %v256 = vpop.f32.mrb[0].mxu0
    %v257 = vadd.f32 %v61, %v256
    %v258 = vpop.f32.mrb[0].mxu0
    %259 = vdwg.mxu0
    %v260 = vmax.f32 %v182, 0.0
    %v261 = vmax.f32 %v187, 0.0
    %v262 = vmax.f32 %v192, 0.0
    %v263 = vmax.f32 %v197, 0.0
    %v264 = vmax.f32 %v202, 0.0
    %v265 = vmax.f32 %v207, 0.0
    %v266 = vmax.f32 %v212, 0.0
    %v267 = vmax.f32 %v217, 0.0
    %v268 = vmax.f32 %v222, 0.0
    %v269 = vmax.f32 %v227, 0.0
    %v270 = vmax.f32 %v232, 0.0
    %v271 = vmax.f32 %v237, 0.0
    %v272 = vmax.f32 %v242, 0.0
    %v273 = vmax.f32 %v247, 0.0
    %v274 = vmax.f32 %v252, 0.0
    %v275 = vmax.f32 %v257, 0.0
    %v276 = vld [vmem:[%s3] sm:$0xff]
    %v277 = vld [vmem:[%s3 + $0x8] sm:$0xff]
    %v278 = vld [vmem:[%s3 + $0x10] sm:$0xff]
    %v279 = vld [vmem:[%s3 + $0x18] sm:$0xff]
    %v280 = vld [vmem:[%s4] sm:$0x1]
    %v282 = vlaneseq
    %v283 = vshrl.u32 %v282, 7
    %v284 = vsub.s32 0, %v283
    %v285 = vrot.slane %v280, %v284
    %vm287 = vcmask 261120
    %v289 = vsel %vm287, %v260, 0
    %v292 = vsel %vm287, %v261, 0
    %v295 = vsel %vm287, %v262, 0
    %v298 = vsel %vm287, %v263, 0
    %v301 = vsel %vm287, %v264, 0
    %v304 = vsel %vm287, %v265, 0
    %v307 = vsel %vm287, %v266, 0
    %v310 = vsel %vm287, %v267, 0
    %v313 = vsel %vm287, %v268, 0
    %v316 = vsel %vm287, %v269, 0
    %v319 = vsel %vm287, %v270, 0
    %v322 = vsel %vm287, %v271, 0
    %v325 = vsel %vm287, %v272, 0
    %v328 = vsel %vm287, %v273, 0
    %v331 = vsel %vm287, %v274, 0
    %v334 = vsel %vm287, %v275, 0
    %336 = vmatprep.subr.mxu0 0.0
    %337 = vmatpush1.msra.mxu0 %v276
    %338 = vmatprep.subr.mxu0 0.0
    %339 = vmatpush1.msra.mxu0 %v277
    %340 = vmatprep.subr.mxu0 0.0
    %341 = vmatpush1.msra.mxu0 %v278
    %342 = vmatprep.subr.mxu0 0.0
    %343 = vmatpush1.msra.mxu0 %v279
    %344 = vmatprep.subr.mxu0 0.0
    %345 = vmatpush1.msra.mxu0 0.0
    %346 = vmatprep.subr.mxu0 0.0
    %347 = vmatpush1.msra.mxu0 0.0
    %348 = vmatprep.subr.mxu0 0.0
    %349 = vmatpush1.msra.mxu0 0.0
    %350 = vmatprep.subr.mxu0 0.0
    %351 = vmatpush1.msra.mxu0 0.0
    %352 = vmatprep.subr.mxu0 0.0
    %353 = vmatpush1.msra.mxu0 0.0
    %354 = vmatprep.subr.mxu0 0.0
    %355 = vmatpush1.msra.mxu0 0.0
    %356 = vmatprep.subr.mxu0 0.0
    %357 = vmatpush1.msra.mxu0 0.0
    %358 = vmatprep.subr.mxu0 0.0
    %359 = vmatpush1.msra.mxu0 0.0
    %360 = vmatprep.subr.mxu0 0.0
    %361 = vmatpush1.msra.mxu0 0.0
    %362 = vmatprep.subr.mxu0 0.0
    %363 = vmatpush1.msra.mxu0 0.0
    %364 = vmatprep.subr.mxu0 0.0
    %365 = vmatpush1.msra.mxu0 0.0
    %366 = vmatprep.subr.mxu0 0.0
    %367 = vmatpush1.msra.mxu0 0.0
    %368 = vmatprep.subr.mxu0 0.0
    %369 = vmatpush1.msra.mxu0 0.0
    %370 = vmatprep.subr.mxu0 0.0
    %371 = vmatpush1.msra.mxu0 0.0
    %372 = vmatprep.subr.mxu0 0.0
    %373 = vmatpush1.msra.mxu0 0.0
    %374 = vmatprep.subr.mxu0 0.0
    %375 = vmatpush1.msra.mxu0 0.0
    %376 = vmatprep.subr.mxu0 0.0
    %377 = vmatpush1.msra.mxu0 0.0
    %378 = vmatprep.subr.mxu0 0.0
    %379 = vmatpush1.msra.mxu0 0.0
    %380 = vmatprep.subr.mxu0 0.0
    %381 = vmatpush1.msra.mxu0 0.0
    %382 = vmatprep.subr.mxu0 0.0
    %383 = vmatpush1.msra.mxu0 0.0
    %384 = vmatprep.subr.mxu0 0.0
    %385 = vmatpush1.msra.mxu0 0.0
    %386 = vmatprep.subr.mxu0 0.0
    %387 = vmatpush1.msra.mxu0 0.0
    %388 = vmatprep.subr.mxu0 0.0
    %389 = vmatpush1.msra.mxu0 0.0
    %390 = vmatprep.subr.mxu0 0.0
    %391 = vmatpush1.msra.mxu0 0.0
    %392 = vmatprep.subr.mxu0 0.0
    %393 = vmatpush1.msra.mxu0 0.0
    %394 = vmatprep.subr.mxu0 0.0
    %395 = vmatpush1.msra.mxu0 0.0
    %396 = vmatprep.subr.mxu0 0.0
    %397 = vmatpush1.msra.mxu0 0.0
    %398 = vmatprep.subr.mxu0 0.0
    %399 = vmatpush1.msra.mxu0 0.0
    %400 = vmatprep.mubr.f32.mxu0 0.0
    %401 = vmatmul.mubr.f32.gmra.mrb[0].mxu0 %v289
    %v402 = vpop.f32.mrb[0].mxu0
    %v403 = vadd.f32 %v285, %v402
    %v404 = vpop.f32.mrb[0].mxu0
    %405 = vmatprep.mubr.f32.mxu0 0.0
    %406 = vmatmul.mubr.f32.gmra.mrb[0].mxu0 %v292
    %v407 = vpop.f32.mrb[0].mxu0
    %v408 = vadd.f32 %v285, %v407
    %v409 = vpop.f32.mrb[0].mxu0
    %410 = vmatprep.mubr.f32.mxu0 0.0
    %411 = vmatmul.mubr.f32.gmra.mrb[0].mxu0 %v295
    %v412 = vpop.f32.mrb[0].mxu0
    %v413 = vadd.f32 %v285, %v412
    %v414 = vpop.f32.mrb[0].mxu0
    %415 = vmatprep.mubr.f32.mxu0 0.0
    %416 = vmatmul.mubr.f32.gmra.mrb[0].mxu0 %v298
    %v417 = vpop.f32.mrb[0].mxu0
    %v418 = vadd.f32 %v285, %v417
    %v419 = vpop.f32.mrb[0].mxu0
    %420 = vmatprep.mubr.f32.mxu0 0.0
    %421 = vmatmul.mubr.f32.gmra.mrb[0].mxu0 %v301
    %v422 = vpop.f32.mrb[0].mxu0
    %v423 = vadd.f32 %v285, %v422
    %v424 = vpop.f32.mrb[0].mxu0
    %425 = vmatprep.mubr.f32.mxu0 0.0
    %426 = vmatmul.mubr.f32.gmra.mrb[0].mxu0 %v304
    %v427 = vpop.f32.mrb[0].mxu0
    %v428 = vadd.f32 %v285, %v427
    %v429 = vpop.f32.mrb[0].mxu0
    %430 = vmatprep.mubr.f32.mxu0 0.0
    %431 = vmatmul.mubr.f32.gmra.mrb[0].mxu0 %v307
    %v432 = vpop.f32.mrb[0].mxu0
    %v433 = vadd.f32 %v285, %v432
    %v434 = vpop.f32.mrb[0].mxu0
    %435 = vmatprep.mubr.f32.mxu0 0.0
    %436 = vmatmul.mubr.f32.gmra.mrb[0].mxu0 %v310
    %v437 = vpop.f32.mrb[0].mxu0
    %v438 = vadd.f32 %v285, %v437
    %v439 = vpop.f32.mrb[0].mxu0
    %440 = vmatprep.mubr.f32.mxu0 0.0
    %441 = vmatmul.mubr.f32.gmra.mrb[0].mxu0 %v313
    %v442 = vpop.f32.mrb[0].mxu0
    %v443 = vadd.f32 %v285, %v442
    %v444 = vpop.f32.mrb[0].mxu0
    %445 = vmatprep.mubr.f32.mxu0 0.0
    %446 = vmatmul.mubr.f32.gmra.mrb[0].mxu0 %v316
    %v447 = vpop.f32.mrb[0].mxu0
    %v448 = vadd.f32 %v285, %v447
    %v449 = vpop.f32.mrb[0].mxu0
    %450 = vmatprep.mubr.f32.mxu0 0.0
    %451 = vmatmul.mubr.f32.gmra.mrb[0].mxu0 %v319
    %v452 = vpop.f32.mrb[0].mxu0
    %v453 = vadd.f32 %v285, %v452
    %v454 = vpop.f32.mrb[0].mxu0
    %455 = vmatprep.mubr.f32.mxu0 0.0
    %456 = vmatmul.mubr.f32.gmra.mrb[0].mxu0 %v322
    %v457 = vpop.f32.mrb[0].mxu0
    %v458 = vadd.f32 %v285, %v457
    %v459 = vpop.f32.mrb[0].mxu0
    %460 = vmatprep.mubr.f32.mxu0 0.0
    %461 = vmatmul.mubr.f32.gmra.mrb[0].mxu0 %v325
    %v462 = vpop.f32.mrb[0].mxu0
    %v463 = vadd.f32 %v285, %v462
    %v464 = vpop.f32.mrb[0].mxu0
    %465 = vmatprep.mubr.f32.mxu0 0.0
    %466 = vmatmul.mubr.f32.gmra.mrb[0].mxu0 %v328
    %v467 = vpop.f32.mrb[0].mxu0
    %v468 = vadd.f32 %v285, %v467
    %v469 = vpop.f32.mrb[0].mxu0
    %470 = vmatprep.mubr.f32.mxu0 0.0
    %471 = vmatmul.mubr.f32.gmra.mrb[0].mxu0 %v331
    %v472 = vpop.f32.mrb[0].mxu0
    %v473 = vadd.f32 %v285, %v472
    %v474 = vpop.f32.mrb[0].mxu0
    %475 = vmatprep.mubr.f32.mxu0 0.0
    %476 = vmatmul.mubr.f32.gmra.mrb[0].mxu0 %v334
    %v477 = vpop.f32.mrb[0].mxu0
    %v478 = vadd.f32 %v285, %v477
    %v479 = vpop.f32.mrb[0].mxu0
    %480 = vdwg.mxu0
    %v481 = vmax.f32 %v403, 0.0
    %v482 = vmax.f32 %v408, 0.0
    %v483 = vmax.f32 %v413, 0.0
    %v484 = vmax.f32 %v418, 0.0
    %v485 = vmax.f32 %v423, 0.0
    %v486 = vmax.f32 %v428, 0.0
    %v487 = vmax.f32 %v433, 0.0
    %v488 = vmax.f32 %v438, 0.0
    %v489 = vmax.f32 %v443, 0.0
    %v490 = vmax.f32 %v448, 0.0
    %v491 = vmax.f32 %v453, 0.0
    %v492 = vmax.f32 %v458, 0.0
    %v493 = vmax.f32 %v463, 0.0
    %v494 = vmax.f32 %v468, 0.0
    %v495 = vmax.f32 %v473, 0.0
    %v496 = vmax.f32 %v478, 0.0
    %v497 = vld [vmem:[%s5] sm:$0x1]
    %v499 = vlaneseq
    %v500 = vshrl.u32 %v499, 7
    %v501 = vsub.s32 0, %v500
    %v502 = vrot.slane %v497, %v501
    %v504 = vmul.f32 %v481, %v502
    %v505 = vmul.f32 %v482, %v502
    %v506 = vmul.f32 %v483, %v502
    %v507 = vmul.f32 %v484, %v502
    %v508 = vmul.f32 %v485, %v502
    %v509 = vmul.f32 %v486, %v502
    %v510 = vmul.f32 %v487, %v502
    %v511 = vmul.f32 %v488, %v502
    %v512 = vmul.f32 %v489, %v502
    %v513 = vmul.f32 %v490, %v502
    %v514 = vmul.f32 %v491, %v502
    %v515 = vmul.f32 %v492, %v502
    %v516 = vmul.f32 %v493, %v502
    %v517 = vmul.f32 %v494, %v502
    %v518 = vmul.f32 %v495, %v502
    %v519 = vmul.f32 %v496, %v502
    %v520 = vsel %vm287, %v504, 0.0
    %521 = vadd.xlane.f32.xlu0 %v520
    %v522 = vpop.xlane.xlu0 %521
    %v523 = vsel %vm287, %v505, 0.0
    %524 = vadd.xlane.f32.xlu0 %v523
    %v525 = vpop.xlane.xlu0 %524
    %v526 = vsel %vm287, %v506, 0.0
    %527 = vadd.xlane.f32.xlu0 %v526
    %v528 = vpop.xlane.xlu0 %527
    %v529 = vsel %vm287, %v507, 0.0
    %530 = vadd.xlane.f32.xlu0 %v529
    %v531 = vpop.xlane.xlu0 %530
    %v532 = vsel %vm287, %v508, 0.0
    %533 = vadd.xlane.f32.xlu0 %v532
    %v534 = vpop.xlane.xlu0 %533
    %v535 = vsel %vm287, %v509, 0.0
    %536 = vadd.xlane.f32.xlu0 %v535
    %v537 = vpop.xlane.xlu0 %536
    %v538 = vsel %vm287, %v510, 0.0
    %539 = vadd.xlane.f32.xlu0 %v538
    %v540 = vpop.xlane.xlu0 %539
    %v541 = vsel %vm287, %v511, 0.0
    %542 = vadd.xlane.f32.xlu0 %v541
    %v543 = vpop.xlane.xlu0 %542
    %v544 = vsel %vm287, %v512, 0.0
    %545 = vadd.xlane.f32.xlu0 %v544
    %v546 = vpop.xlane.xlu0 %545
    %v547 = vsel %vm287, %v513, 0.0
    %548 = vadd.xlane.f32.xlu0 %v547
    %v549 = vpop.xlane.xlu0 %548
    %v550 = vsel %vm287, %v514, 0.0
    %551 = vadd.xlane.f32.xlu0 %v550
    %v552 = vpop.xlane.xlu0 %551
    %v553 = vsel %vm287, %v515, 0.0
    %554 = vadd.xlane.f32.xlu0 %v553
    %v555 = vpop.xlane.xlu0 %554
    %v556 = vsel %vm287, %v516, 0.0
    %557 = vadd.xlane.f32.xlu0 %v556
    %v558 = vpop.xlane.xlu0 %557
    %v559 = vsel %vm287, %v517, 0.0
    %560 = vadd.xlane.f32.xlu0 %v559
    %v561 = vpop.xlane.xlu0 %560
    %v562 = vsel %vm287, %v518, 0.0
    %563 = vadd.xlane.f32.xlu0 %v562
    %v564 = vpop.xlane.xlu0 %563
    %v565 = vsel %vm287, %v519, 0.0
    %566 = vadd.xlane.f32.xlu0 %v565
    %v567 = vpop.xlane.xlu0 %566
    %s568 = sld [smem:[#allocation2]]
    %v569 = vstv %s568
    %v570 = vadd.f32 %v522, %v569
    %v571 = vadd.f32 %v525, %v569
    %v572 = vadd.f32 %v528, %v569
    %v573 = vadd.f32 %v531, %v569
    %v574 = vadd.f32 %v534, %v569
    %v575 = vadd.f32 %v537, %v569
    %v576 = vadd.f32 %v540, %v569
    %v577 = vadd.f32 %v543, %v569
    %v578 = vadd.f32 %v546, %v569
    %v579 = vadd.f32 %v549, %v569
    %v580 = vadd.f32 %v552, %v569
    %v581 = vadd.f32 %v555, %v569
    %v582 = vadd.f32 %v558, %v569
    %v583 = vadd.f32 %v561, %v569
    %v584 = vadd.f32 %v564, %v569
    %v585 = vadd.f32 %v567, %v569
    %v602 = vlaneseq
    %v603 = vand.u32 %v602, 127
    %v604 = vlaneseq
    %v605 = vshrl.u32 %v604, 7
    %v606 = vsub.s32 %v603, %v605
    %v607 = vrot.slane %v570, %v606
    %v608 = vadd.s32 %v603, 4294967288
    %v609 = vlaneseq
    %v610 = vshrl.u32 %v609, 7
    %v611 = vsub.s32 %v608, %v610
    %v612 = vrot.slane %v571, %v611
    %vm613 = vcmask 130112
    %v614 = vsel %vm613, %v612, %v607
    %v615 = vadd.s32 %v603, 4294967280
    %v616 = vlaneseq
    %v617 = vshrl.u32 %v616, 7
    %v618 = vsub.s32 %v615, %v617
    %v619 = vrot.slane %v572, %v618
    %vm620 = vcmask 195712
    %v621 = vsel %vm620, %v619, %v614
    %v622 = vadd.s32 %v603, 4294967272
    %v623 = vlaneseq
    %v624 = vshrl.u32 %v623, 7
    %v625 = vsub.s32 %v622, %v624
    %v626 = vrot.slane %v573, %v625
    %vm627 = vcmask 261312
    %v628 = vsel %vm627, %v626, %v621
    %v629 = vadd.s32 %v603, 4294967264
    %v630 = vlaneseq
    %v631 = vshrl.u32 %v630, 7
    %v632 = vsub.s32 %v629, %v631
    %v633 = vrot.slane %v574, %v632
    %vm634 = vcmask 326912
    %v635 = vsel %vm634, %v633, %v628
    %v636 = vadd.s32 %v603, 4294967256
    %v637 = vlaneseq
    %v638 = vshrl.u32 %v637, 7
    %v639 = vsub.s32 %v636, %v638
    %v640 = vrot.slane %v575, %v639
    %vm641 = vcmask 392512
    %v642 = vsel %vm641, %v640, %v635
    %v643 = vadd.s32 %v603, 4294967248
    %v644 = vlaneseq
    %v645 = vshrl.u32 %v644, 7
    %v646 = vsub.s32 %v643, %v645
    %v647 = vrot.slane %v576, %v646
    %vm648 = vcmask 458112
    %v649 = vsel %vm648, %v647, %v642
    %v650 = vadd.s32 %v603, 4294967240
    %v651 = vlaneseq
    %v652 = vshrl.u32 %v651, 7
    %v653 = vsub.s32 %v650, %v652
    %v654 = vrot.slane %v577, %v653
    %vm655 = vcmask 523712
    %v656 = vsel %vm655, %v654, %v649
    %v657 = vadd.s32 %v603, 4294967232
    %v658 = vlaneseq
    %v659 = vshrl.u32 %v658, 7
    %v660 = vsub.s32 %v657, %v659
    %v661 = vrot.slane %v578, %v660
    %vm662 = vcmask 589312
    %v663 = vsel %vm662, %v661, %v656
    %v664 = vadd.s32 %v603, 4294967224
    %v665 = vlaneseq
    %v666 = vshrl.u32 %v665, 7
    %v667 = vsub.s32 %v664, %v666
    %v668 = vrot.slane %v579, %v667
    %vm669 = vcmask 654912
    %v670 = vsel %vm669, %v668, %v663
    %v671 = vadd.s32 %v603, 4294967216
    %v672 = vlaneseq
    %v673 = vshrl.u32 %v672, 7
    %v674 = vsub.s32 %v671, %v673
    %v675 = vrot.slane %v580, %v674
    %vm676 = vcmask 720512
    %v677 = vsel %vm676, %v675, %v670
    %v678 = vadd.s32 %v603, 4294967208
    %v679 = vlaneseq
    %v680 = vshrl.u32 %v679, 7
    %v681 = vsub.s32 %v678, %v680
    %v682 = vrot.slane %v581, %v681
    %vm683 = vcmask 786112
    %v684 = vsel %vm683, %v682, %v677
    %v685 = vadd.s32 %v603, 4294967200
    %v686 = vlaneseq
    %v687 = vshrl.u32 %v686, 7
    %v688 = vsub.s32 %v685, %v687
    %v689 = vrot.slane %v582, %v688
    %vm690 = vcmask 851712
    %v691 = vsel %vm690, %v689, %v684
    %v692 = vadd.s32 %v603, 4294967192
    %v693 = vlaneseq
    %v694 = vshrl.u32 %v693, 7
    %v695 = vsub.s32 %v692, %v694
    %v696 = vrot.slane %v583, %v695
    %vm697 = vcmask 917312
    %v698 = vsel %vm697, %v696, %v691
    %v699 = vadd.s32 %v603, 4294967184
    %v700 = vlaneseq
    %v701 = vshrl.u32 %v700, 7
    %v702 = vsub.s32 %v699, %v701
    %v703 = vrot.slane %v584, %v702
    %vm704 = vcmask 982912
    %v705 = vsel %vm704, %v703, %v698
    %v706 = vadd.s32 %v603, 4294967176
    %v707 = vlaneseq
    %v708 = vshrl.u32 %v707, 7
    %v709 = vsub.s32 %v706, %v708
    %v710 = vrot.slane %v585, %v709
    %vm711 = vcmask 1048512
    %v712 = vsel %vm711, %v710, %v705
    %714 = vst [vmem:[#allocation3] sm:$0x1] %v712
    // Predicated region
    $region30: #{tpu_custom_call.1} parent=1 // pred_check
      _
    $region31: #{tpu_custom_call.1} parent=1 // pred_check_branch
      %716 = sbr.rel (0) target = $region33
    $region32: #{tpu_custom_call.1} parent=1 // pred_region
      %s718 = ssub.s32 16, 16
      %719 = vsyncadd [#allocation4], %s718
      %s721 = sshll.u32 [#allocation3], 4
      %s722 = int_to_ptr.vmem [resolvable:$true] %s721
      %724 = dma.vmem_to_hbm [thread:$0]  %s722, 16, %s7, [#allocation4]
    $region33: #{tpu_custom_call.1} parent=1 // pred_fallthru
      _
    // Predicated region
    $region34: #{tpu_custom_call.1} parent=1 // pred_check
      _
    $region35: #{tpu_custom_call.1} parent=1 // pred_check_branch
      %726 = sbr.rel (0) target = $region37
    $region36: #{tpu_custom_call.1} parent=1 // pred_region
      %727 = dma.done [#allocation4], 16
    $region37: #{tpu_custom_call.1} parent=1 // pred_fallthru
      _
    %728 = vsyncpa [#allocation4], 1

</llo_original>
